<compile_context>
chip_gen: v7x
topology: tpu7x:2x2x1
jax: 0.10.0
libtpu: 0.0.40
codegen_flags: <defaults>
</compile_context>

<pallas_src>
import jax
import jax.numpy as jnp
from jax.experimental import pallas as pl
from jax.experimental.pallas import tpu as pltpu

EPS = 1e-5  # PyTorch BatchNorm2d default


# --------------------------------------------------------------------------- #
# Sweep 1: global per-channel batch statistics (shifted moments, per-lane).
# --------------------------------------------------------------------------- #
def _stats_kernel(x_ref, w_ref, sum_ref, sumsq_ref, shift_ref):
    first = (pl.program_id(0) == 0) & (pl.program_id(1) == 0)

    # 1x1 conv == channel matmul. Conv bias intentionally dropped: training-mode
    # BN subtracts the batch mean right afterwards, so it cancels exactly.
    y = jnp.dot(w_ref[...], x_ref[...], preferred_element_type=jnp.float32)

    @pl.when(first)
    def _init():
        # Shifted-moment scheme: first tile's channel means as shift keeps the
        # f32 sum-of-squares accumulation well conditioned.
        shift_ref[...] = jnp.mean(y, axis=1, keepdims=True)
        sum_ref[...] = jnp.zeros_like(sum_ref)
        sumsq_ref[...] = jnp.zeros_like(sumsq_ref)

    d = y - shift_ref[...]
    lw = sum_ref.shape[1]                       # per-lane partial width (128 usually)
    s = sum_ref[...]
    ss = sumsq_ref[...]
    # Static unroll over 128-lane chunks: full-width VPU adds each step; the one
    # cross-lane (XLU) reduction is deferred to the host-side finalize.
    for k in range(d.shape[1] // lw):
        c = d[:, k * lw:(k + 1) * lw]
        s = s + c
        ss = ss + c * c
    sum_ref[...] = s
    sumsq_ref[...] = ss


# --------------------------------------------------------------------------- #
# Sweep 2: scaled conv + offset + ReLU (scale already folded into the weights).
# --------------------------------------------------------------------------- #
def _norm_kernel(x_ref, ws_ref, off_ref, o_ref):
    y = jnp.dot(ws_ref[...], x_ref[...], preferred_element_type=jnp.float32)
    # Lane-dense (tile_hw multiple of 128) unmasked store.
    o_ref[...] = jnp.maximum(y + off_ref[...], 0.0).astype(o_ref.dtype)


# --------------------------------------------------------------------------- #
# Tile / VMEM sizing.
# --------------------------------------------------------------------------- #
def _pick_tile_hw(HW, C_in, C_out):
    """Largest multiple-of-128 divisor of HW within a byte budget and VMEM cap."""
    if HW % 128 != 0:
        return HW                                    # lane-masked stores; still correct
    bytes_per_lane = 4 * (C_in + C_out)              # streamed x + out per lane (f32)
    target = max(128, (4 << 20) // bytes_per_lane)   # ~4 MiB of streamed data / step
    # double-buffered x/out blocks + y intermediate + 2x weight must fit ~40 MiB
    per_lane_vmem = 4 * (2 * (C_in + C_out) + C_out)
    cap = max(128, ((40 << 20) - 8 * C_out * C_in) // per_lane_vmem)
    limit = min(target, cap, HW, 8192)               # 8192: bound epilogue unroll
    best, t = 128, 128
    while t <= min(limit, HW):
        if HW % t == 0:
            best = t
        t += 128
    return best


def _vmem_limit_bytes(C_in, C_out, tile_hw):
    need = 4 * (2 * (C_in + C_out) * tile_hw        # double-buffered x + out blocks
                + C_out * tile_hw                    # y intermediate
                + 2 * (C_out * C_in + 2 * C_out))    # weight + offset (x2 safety)
    return int(min(max(need + (8 << 20), 32 << 20), 64 << 20))


# --------------------------------------------------------------------------- #
# Forward wrapper.
# --------------------------------------------------------------------------- #
def convblock_forward(x_nchw, weight, gamma, beta, *, tile_hw=None, dot_dtype=None):
    """ConvBlock(C_in, C_out, kernel=1, stride=1) forward (training-mode BN).

    x_nchw: (N, C_in, H, W) f32 (PyTorch layout).
    weight: (C_out, C_in)  -- the squeezed (out, in, 1, 1) Conv2d weight.
    gamma, beta: (C_out,)  -- BatchNorm2d affine parameters.
    dot_dtype: optional (e.g. jnp.bfloat16) to halve x/weight HBM reads; BN
               statistics and scale/offset math stay f32.
    """
    N, C_in, H, W = x_nchw.shape
    C_out = weight.shape[0]
    HW = H * W

    # Free view of NCHW (no transpose); HW lands on the lane axis.
    x3 = x_nchw.reshape(N, C_in, HW)
    if dot_dtype is not None:
        x3 = x3.astype(dot_dtype)

    if tile_hw is None:
        tile_hw = _pick_tile_hw(HW, C_in, C_out)
    assert HW % tile_hw == 0, "tile_hw must divide H*W"
    n_tiles = HW // tile_hw
    lw = 128 if tile_hw % 128 == 0 else tile_hw      # per-lane partial width

    vmem_limit = _vmem_limit_bytes(C_in, C_out, tile_hw)
    w_mm = weight if dot_dtype is None else weight.astype(dot_dtype)

    # ---------------- sweep 1: batch statistics (serial accumulation) ----------------
    sum_p, sumsq_p, shift = pl.pallas_call(
        _stats_kernel,
        out_shape=(jax.ShapeDtypeStruct((C_out, lw), jnp.float32),
                   jax.ShapeDtypeStruct((C_out, lw), jnp.float32),
                   jax.ShapeDtypeStruct((C_out, 1), jnp.float32)),
        grid_spec=pltpu.PrefetchScalarGridSpec(
            num_scalar_prefetch=0,
            grid=(N, n_tiles),
            in_specs=[
                pl.BlockSpec((pl.Squeezed(), C_in, tile_hw),
                             lambda n, j: (n, 0, j)),
                # weight: constant index -> stays VMEM-resident across steps
                pl.BlockSpec((C_out, C_in), lambda n, j: (0, 0)),
            ],
            out_specs=[
                # constant index -> resident accumulators, written back once at end
                pl.BlockSpec((C_out, lw), lambda n, j: (0, 0)),
                pl.BlockSpec((C_out, lw), lambda n, j: (0, 0)),
                pl.BlockSpec((C_out, 1), lambda n, j: (0, 0)),
            ],
        ),
        compiler_params=pltpu.CompilerParams(
            dimension_semantics=("arbitrary", "arbitrary"),
            vmem_limit_bytes=vmem_limit),
    )(x3, w_mm)

    # ---------------- tiny finalize (C_out scalars) in plain JAX ----------------
    inv_m = 1.0 / float(N * HW)
    s = jnp.sum(sum_p, axis=1)
    ss = jnp.sum(sumsq_p, axis=1)
    dmean = s * inv_m                                     # E[y] - shift
    var = jnp.maximum(ss * inv_m - dmean * dmean, 0.0)    # biased batch var, clamped
    mean = dmean + shift[:, 0]
    scale = gamma * jax.lax.rsqrt(var + EPS)
    offset = (beta - mean * scale)[:, None]               # (C_out, 1)
    w_scaled = scale[:, None] * weight                    # fold BN scale into weights
    if dot_dtype is not None:
        w_scaled = w_scaled.astype(dot_dtype)

    # ---------------- sweep 2: scaled conv + offset + ReLU (fully parallel) ----------------
    out3 = pl.pallas_call(
        _norm_kernel,
        out_shape=jax.ShapeDtypeStruct((N, C_out, HW), x_nchw.dtype),
        grid_spec=pltpu.PrefetchScalarGridSpec(
            num_scalar_prefetch=0,
            grid=(N, n_tiles),
            in_specs=[
                pl.BlockSpec((pl.Squeezed(), C_in, tile_hw),
                             lambda n, j: (n, 0, j)),
                pl.BlockSpec((C_out, C_in), lambda n, j: (0, 0)),   # VMEM-resident
                pl.BlockSpec((C_out, 1), lambda n, j: (0, 0)),      # VMEM-resident
            ],
            out_specs=pl.BlockSpec((pl.Squeezed(), C_out, tile_hw),
                                   lambda n, j: (n, 0, j)),
        ),
        compiler_params=pltpu.CompilerParams(
            # Independent per (batch, HW-tile) -> both TensorCores on v7x megacore.
            dimension_semantics=("parallel", "parallel"),
            vmem_limit_bytes=vmem_limit),
    )(x3, w_scaled, offset)

    return out3.reshape(N, C_out, H, W)


# --------------------------------------------------------------------------- #
# Pure-JAX mirror of the PyTorch forward (training-mode BatchNorm, with conv bias).
# --------------------------------------------------------------------------- #
def convblock_reference(x_nchw, weight, bias, gamma, beta):
    N, C_in, H, W = x_nchw.shape
    C_out = weight.shape[0]
    x3 = x_nchw.reshape(N, C_in, H * W)
    y = jnp.einsum("oc,nch->noh", weight, x3) + bias[None, :, None]
    m = y.mean(axis=(0, 2), keepdims=True)
    v = ((y - m) ** 2).mean(axis=(0, 2), keepdims=True)   # biased (training mode)
    yn = (y - m) * jax.lax.rsqrt(v + EPS) * gamma[None, :, None] + beta[None, :, None]
    return jnp.maximum(yn, 0.0).reshape(N, C_out, H, W)


if __name__ == "__main__":
    # ConvBlock(in_channels=4, out_channels=8, kernel=1, stride=1)
    N, C_IN, C_OUT, H, W = 2, 4, 8, 16, 16
    key = jax.random.PRNGKey(0)
    kx, kw, kb, kg, kbe = jax.random.split(key, 5)

    x = jax.random.normal(kx, (N, C_IN, H, W), jnp.float32)
    w = 0.2 * jax.random.normal(kw, (C_OUT, C_IN), jnp.float32)   # Conv2d (out,in,1,1) squeezed
    b = 0.1 * jax.random.normal(kb, (C_OUT,), jnp.float32)        # Conv2d bias (cancels under BN)
    gamma = 1.0 + 0.1 * jax.random.normal(kg, (C_OUT,), jnp.float32)
    beta = 0.1 * jax.random.normal(kbe, (C_OUT,), jnp.float32)

    # tile_hw=128 exercises the multi-tile (two HW tiles per sample) stats path;
    # the default byte-budget selection would pick tile_hw = H*W = 256 here.
    out = jax.block_until_ready(convblock_forward(x, w, gamma, beta, tile_hw=128))
    ref = jax.block_until_ready(convblock_reference(x, w, b, gamma, beta))

    assert out.shape == (N, C_OUT, H, W)
    assert jnp.allclose(out, ref, atol=1e-4, rtol=1e-4), "mismatch vs reference"
    print("KERNEL_OK")
</pallas_src>

<mosaic_0001>
module attributes {stable_mosaic.version = 11 : i64} {
  func.func @_stats_kernel(%arg0: i32, %arg1: i32, %arg2: memref<1x4x128xf32, #tpu.memory_space<vmem>>, %arg3: memref<8x4xf32, #tpu.memory_space<vmem>>, %arg4: memref<8x128xf32, #tpu.memory_space<vmem>>, %arg5: memref<8x128xf32, #tpu.memory_space<vmem>>, %arg6: memref<8x1xf32, #tpu.memory_space<vmem>>) attributes {dimension_semantics = [#tpu.dimension_semantics<arbitrary>, #tpu.dimension_semantics<arbitrary>], iteration_bounds = array<i64: 2, 2>, scalar_prefetch = 0 : i64, scratch_operands = 0 : i64, tpu.core_type = #tpu.core_type<tc>, window_params = [{transform_indices = @transform_0, window_bounds = array<i64: 1, 4, 128>}, {pipeline_mode = #tpu.pipeline_mode<synchronous>, transform_indices = @transform_1, window_bounds = array<i64: 8, 4>}, {pipeline_mode = #tpu.pipeline_mode<synchronous>, transform_indices = @transform_2, window_bounds = array<i64: 8, 128>}, {pipeline_mode = #tpu.pipeline_mode<synchronous>, transform_indices = @transform_3, window_bounds = array<i64: 8, 128>}, {pipeline_mode = #tpu.pipeline_mode<synchronous>, transform_indices = @transform_4, window_bounds = array<i64: 8, 1>}]} {
    %c0_i32 = arith.constant 0 : i32
    %0 = arith.cmpi eq, %arg0, %c0_i32 : i32
    %c0_i32_0 = arith.constant 0 : i32
    %1 = arith.cmpi eq, %arg1, %c0_i32_0 : i32
    %2 = arith.andi %0, %1 : i1
    %c0 = arith.constant 0 : index
    %c0_1 = arith.constant 0 : index
    %3 = vector.load %arg3[%c0, %c0_1] : memref<8x4xf32, #tpu.memory_space<vmem>>, vector<8x4xf32>
    %c0_2 = arith.constant 0 : index
    %c0_3 = arith.constant 0 : index
    %c0_4 = arith.constant 0 : index
    %4 = vector.load %arg2[%c0_2, %c0_3, %c0_4] : memref<1x4x128xf32, #tpu.memory_space<vmem>>, vector<1x4x128xf32>
    %5 = vector.shape_cast %4 : vector<1x4x128xf32> to vector<4x128xf32>
    %cst = arith.constant dense<0.000000e+00> : vector<8x128xf32>
    %6 = tpu.matmul %3, %5, %cst {dimension_numbers = #tpu.dot_dimension_numbers<[1], [0], [0], [1], [0, 0, 1, 1], [], []>} : vector<8x4xf32>, vector<4x128xf32>, vector<8x128xf32> -> vector<8x128xf32>
    %7 = arith.extui %2 : i1 to i32
    %c0_i32_5 = arith.constant 0 : i32
    %8 = arith.cmpi ne, %7, %c0_i32_5 : i32
    scf.if %8 {
      %cst_16 = arith.constant dense<0.000000e+00> : vector<8xf32>
      %19 = vector.multi_reduction <add>, %6, %cst_16 [1] : vector<8x128xf32> to vector<8xf32>
      %20 = vector.shape_cast %19 : vector<8xf32> to vector<8x1xf32>
      %cst_17 = arith.constant 1.280000e+02 : f32
      %21 = vector.broadcast %cst_17 : f32 to vector<8x1xf32>
      %22 = arith.divf %20, %21 : vector<8x1xf32>
      %c0_18 = arith.constant 0 : index
      %c0_19 = arith.constant 0 : index
      %23 = vector.load %arg6[%c0_18, %c0_19] : memref<8x1xf32, #tpu.memory_space<vmem>>, vector<8x1xf32>
      tpu.vector_store %arg6[%c0_18, %c0_19], %22 {strides = array<i32>} : memref<8x1xf32, #tpu.memory_space<vmem>>, vector<8x1xf32>,
      %cst_20 = arith.constant 0.000000e+00 : f32
      %24 = vector.broadcast %cst_20 : f32 to vector<8x128xf32>
      %c0_21 = arith.constant 0 : index
      %c0_22 = arith.constant 0 : index
      %25 = vector.load %arg4[%c0_21, %c0_22] : memref<8x128xf32, #tpu.memory_space<vmem>>, vector<8x128xf32>
      tpu.vector_store %arg4[%c0_21, %c0_22], %24 {strides = array<i32>} : memref<8x128xf32, #tpu.memory_space<vmem>>, vector<8x128xf32>,
      %cst_23 = arith.constant 0.000000e+00 : f32
      %26 = vector.broadcast %cst_23 : f32 to vector<8x128xf32>
      %c0_24 = arith.constant 0 : index
      %c0_25 = arith.constant 0 : index
      %27 = vector.load %arg5[%c0_24, %c0_25] : memref<8x128xf32, #tpu.memory_space<vmem>>, vector<8x128xf32>
      tpu.vector_store %arg5[%c0_24, %c0_25], %26 {strides = array<i32>} : memref<8x128xf32, #tpu.memory_space<vmem>>, vector<8x128xf32>,
    } else {
    }
    %c0_6 = arith.constant 0 : index
    %c0_7 = arith.constant 0 : index
    %9 = vector.load %arg6[%c0_6, %c0_7] : memref<8x1xf32, #tpu.memory_space<vmem>>, vector<8x1xf32>
    %10 = vector.broadcast %9 : vector<8x1xf32> to vector<8x128xf32>
    %11 = arith.subf %6, %10 : vector<8x128xf32>
    %c0_8 = arith.constant 0 : index
    %c0_9 = arith.constant 0 : index
    %12 = vector.load %arg4[%c0_8, %c0_9] : memref<8x128xf32, #tpu.memory_space<vmem>>, vector<8x128xf32>
    %c0_10 = arith.constant 0 : index
    %c0_11 = arith.constant 0 : index
    %13 = vector.load %arg5[%c0_10, %c0_11] : memref<8x128xf32, #tpu.memory_space<vmem>>, vector<8x128xf32>
    %14 = arith.addf %12, %11 : vector<8x128xf32>
    %15 = arith.mulf %11, %11 : vector<8x128xf32>
    %16 = arith.addf %13, %15 : vector<8x128xf32>
    %c0_12 = arith.constant 0 : index
    %c0_13 = arith.constant 0 : index
    %17 = vector.load %arg4[%c0_12, %c0_13] : memref<8x128xf32, #tpu.memory_space<vmem>>, vector<8x128xf32>
    tpu.vector_store %arg4[%c0_12, %c0_13], %14 {strides = array<i32>} : memref<8x128xf32, #tpu.memory_space<vmem>>, vector<8x128xf32>,
    %c0_14 = arith.constant 0 : index
    %c0_15 = arith.constant 0 : index
    %18 = vector.load %arg5[%c0_14, %c0_15] : memref<8x128xf32, #tpu.memory_space<vmem>>, vector<8x128xf32>
    tpu.vector_store %arg5[%c0_14, %c0_15], %16 {strides = array<i32>} : memref<8x128xf32, #tpu.memory_space<vmem>>, vector<8x128xf32>,
    return
  }
  func.func @transform_0(%arg0: i32, %arg1: i32) -> (i32, i32, i32) {
    %c0_i32 = arith.constant 0 : i32
    %c0_i32_0 = arith.constant 0 : i32
    return %arg0, %c0_i32, %arg1 : i32, i32, i32
  }
  func.func @transform_1(%arg0: i32, %arg1: i32) -> (i32, i32) {
    %c0_i32 = arith.constant 0 : i32
    %c0_i32_0 = arith.constant 0 : i32
    %c0_i32_1 = arith.constant 0 : i32
    return %c0_i32, %c0_i32_0 : i32, i32
  }
  func.func @transform_2(%arg0: i32, %arg1: i32) -> (i32, i32) {
    %c0_i32 = arith.constant 0 : i32
    %c0_i32_0 = arith.constant 0 : i32
    %c0_i32_1 = arith.constant 0 : i32
    return %c0_i32, %c0_i32_0 : i32, i32
  }
  func.func @transform_3(%arg0: i32, %arg1: i32) -> (i32, i32) {
    %c0_i32 = arith.constant 0 : i32
    %c0_i32_0 = arith.constant 0 : i32
    %c0_i32_1 = arith.constant 0 : i32
    return %c0_i32, %c0_i32_0 : i32, i32
  }
  func.func @transform_4(%arg0: i32, %arg1: i32) -> (i32, i32) {
    %c0_i32 = arith.constant 0 : i32
    %c0_i32_0 = arith.constant 0 : i32
    %c0_i32_1 = arith.constant 0 : i32
    return %c0_i32, %c0_i32_0 : i32, i32
  }
}

</mosaic_0001>

<llo_original>
// kernel: tpu_custom_call.1
$region0: #{tpu_custom_call.1}
  #allocation0 [shape = 'u32[]', space=smem, size = 0x4, offset = 0x4, fixed_abs, tag = 'smem constant byte address 0x4 - core index']
  #allocation1 [shape = 'u32[144,128]{1,0:T(1,128)}', space=vmem, size = 0x12000, scoped, tag = 'internal scratch']
  %s0 = inlined_call_operand.hbm [shape: f32[2,4,256], index: 0, kind: input, shape index: {}]
  %s1 = inlined_call_operand.vmem [shape: f32[8,4], index: 1, kind: input, shape index: {}]
  %s2 = inlined_call_operand.hbm [shape: f32[8,128], index: 2, kind: output, shape index: {0}]
  %s3 = inlined_call_operand.hbm [shape: f32[8,128], index: 3, kind: output, shape index: {1}]
  %s4 = inlined_call_operand.vmem [shape: f32[8,1], index: 4, kind: output, shape index: {2}]
  %5 = xla_tuple %s2, %s3, %s4
  %s6 = sld [smem:[#allocation0]]
  $region65: #{tpu_custom_call.1} parent=0
    _
  %s8 = ssub.s32 1, %s6
  %s9 = scalar_select 0, %s8, %s6
  $region1: #{tpu_custom_call.1} parent=0
    #allocation2 [shape = 'u8[4096]{0}', space=vmem, size = 0x1000, scoped, tag = 'input window, operand 0']
    #allocation3 [shape = 's32[2]{0}', space=sflag, size = 0x8, scoped, tag = 'scoped memory for tpu_custom_call.1']
    #allocation4 [shape = 's32[2]{0}', space=sflag, size = 0x8, scoped, tag = 'scoped memory for tpu_custom_call.1']
    #allocation5 [shape = 'u8[4096]{0}', space=vmem, size = 0x1000, scoped, tag = 'output window, operand 0, single buffered']
    #allocation6 [shape = 'u8[4096]{0}', space=vmem, size = 0x1000, scoped, tag = 'output window, operand 1, single buffered']
    #allocation7 [shape = 's32[1]{0}', space=sflag, size = 0x4, scoped, tag = 'scoped memory for tpu_custom_call.1']
    %10 = vsyncpa [#allocation3], 0
    %s11 = scalar_lea.sflag [#allocation3], 1
    %12 = vsyncpa %s11, 0
    %13 = vsyncpa [#allocation4], 0
    %14 = vsyncpa [#allocation7], 0
    loop: start=0, step=1, limit=6
    $region2: #{tpu_custom_call.1} parent=1 // loop_pre_header
      _
    $region3: #{tpu_custom_call.1} parent=1 // loop_header
      %s16 = sphi 0, %s20
      %p17 = scmp.ge.s32.totalorder %s16, 6
      %s23 = sphi 0, %s35
      %s24 = sphi 0, %s31
      %s25 = sphi 0, %s23
      %s26 = sphi 0, %s24
      %s27 = sphi 0, %s25
      %s28 = sphi 0, %s26
      %s40 = sphi 0, %s42
      %s43 = sphi 0, %s40
      %s44 = sphi 0, %s43
      %s60 = sphi 0, %s44
      %s64 = sphi 0, %s64
      %s66 = sphi 0, %s64
      %s67 = sphi 0, %s66
      %s81 = sphi 0, %s67
      %s85 = sphi 0, %s85
      %s87 = sphi 0, %s85
      %s88 = sphi 0, %s87
      %s102 = sphi 0, %s88
      %s106 = sphi 0, %s106
      %s108 = sphi 0, %s106
      %s109 = sphi 0, %s108
      %s123 = sphi 0, %s109
      %s127 = sphi 0, %s127
      %s129 = sphi 0, %s127
      %s130 = sphi 0, %s129
      %s144 = sphi 0, %s130
    $region4: #{tpu_custom_call.1} parent=1 // loop_header_branch
      %19 = sbr.rel (%p17) target = $region8
    $region5: #{tpu_custom_call.1} parent=1 // loop_body
      %s21 = ssub.s32 %s16, 1
      %s22 = ssub.s32 %s16, 2
      %s29 = sadd.s32 1, %s24
      %p30 = scmp.ge.s32.totalorder %s29, 2
      %s31 = scalar_select %p30, 0, %s29
      %s32 = sadd.s32 1, %s23
      %s33 = scalar_select %p30, %s32, %s23
      %p34 = scmp.ge.s32.totalorder %s33, 2
      %s35 = scalar_select %p34, 0, %s33
      %s36 = ssub.s32 %s23, %s35
      %s37 = ssub.s32 %s24, %s31
      %s38 = sor.u32 %s36, %s37
      %p39 = scmp.eq.s32.totalorder %s38, 0
      %s41 = sadd.s32 %s40, 1
      %s42 = scalar_select %p39, %s40, %s41
      %p45 = pneg %p39
      %p46 = scmp.eq.s32.totalorder %s16, 3
      %p47 = por %p45, %p46
      %p48 = scmp.ne.s32.totalorder %s40, %s43
      %p49 = scmp.eq.s32.totalorder %s16, 0
      %p50 = por %p48, %p49
      %p51 = scmp.ne.s32.totalorder %s40, %s43
      %p52 = scmp.eq.s32.totalorder %s21, 3
      %p53 = por %p51, %p52
      %p54 = scmp.ne.s32.totalorder %s43, %s44
      %p55 = scmp.eq.s32.totalorder %s21, 0
      %p56 = por %p54, %p55
      %p57 = scmp.ne.s32.totalorder %s43, %s44
      %p58 = scmp.eq.s32.totalorder %s22, 3
      %p59 = por %p57, %p58
      %p61 = scmp.ne.s32.totalorder %s44, %s60
      %p62 = scmp.eq.s32.totalorder %s22, 0
      %p63 = por %p61, %p62
      %s65 = sadd.s32 %s64, 1
      %p68 = scmp.eq.s32.totalorder %s16, 3
      %p69 = scmp.ne.s32.totalorder %s64, %s66
      %p70 = scmp.eq.s32.totalorder %s16, 0
      %p71 = por %p69, %p70
      %p72 = scmp.ne.s32.totalorder %s64, %s66
      %p73 = scmp.eq.s32.totalorder %s21, 3
      %p74 = por %p72, %p73
      %p75 = scmp.ne.s32.totalorder %s66, %s67
      %p76 = scmp.eq.s32.totalorder %s21, 0
      %p77 = por %p75, %p76
      %p78 = scmp.ne.s32.totalorder %s66, %s67
      %p79 = scmp.eq.s32.totalorder %s22, 3
      %p80 = por %p78, %p79
      %p82 = scmp.ne.s32.totalorder %s67, %s81
      %p83 = scmp.eq.s32.totalorder %s22, 0
      %p84 = por %p82, %p83
      %s86 = sadd.s32 %s85, 1
      %p89 = scmp.eq.s32.totalorder %s16, 3
      %p90 = scmp.ne.s32.totalorder %s85, %s87
      %p91 = scmp.eq.s32.totalorder %s16, 0
      %p92 = por %p90, %p91
      %p93 = scmp.ne.s32.totalorder %s85, %s87
      %p94 = scmp.eq.s32.totalorder %s21, 3
      %p95 = por %p93, %p94
      %p96 = scmp.ne.s32.totalorder %s87, %s88
      %p97 = scmp.eq.s32.totalorder %s21, 0
      %p98 = por %p96, %p97
      %p99 = scmp.ne.s32.totalorder %s87, %s88
      %p100 = scmp.eq.s32.totalorder %s22, 3
      %p101 = por %p99, %p100
      %p103 = scmp.ne.s32.totalorder %s88, %s102
      %p104 = scmp.eq.s32.totalorder %s22, 0
      %p105 = por %p103, %p104
      %s107 = sadd.s32 %s106, 1
      %p110 = scmp.eq.s32.totalorder %s16, 3
      %p111 = scmp.ne.s32.totalorder %s106, %s108
      %p112 = scmp.eq.s32.totalorder %s16, 0
      %p113 = por %p111, %p112
      %p114 = scmp.ne.s32.totalorder %s106, %s108
      %p115 = scmp.eq.s32.totalorder %s21, 3
      %p116 = por %p114, %p115
      %p117 = scmp.ne.s32.totalorder %s108, %s109
      %p118 = scmp.eq.s32.totalorder %s21, 0
      %p119 = por %p117, %p118
      %p120 = scmp.ne.s32.totalorder %s108, %s109
      %p121 = scmp.eq.s32.totalorder %s22, 3
      %p122 = por %p120, %p121
      %p124 = scmp.ne.s32.totalorder %s109, %s123
      %p125 = scmp.eq.s32.totalorder %s22, 0
      %p126 = por %p124, %p125
      %s128 = sadd.s32 %s127, 1
      %p131 = scmp.eq.s32.totalorder %s16, 3
      %p132 = scmp.ne.s32.totalorder %s127, %s129
      %p133 = scmp.eq.s32.totalorder %s16, 0
      %p134 = por %p132, %p133
      %p135 = scmp.ne.s32.totalorder %s127, %s129
      %p136 = scmp.eq.s32.totalorder %s21, 3
      %p137 = por %p135, %p136
      %p138 = scmp.ne.s32.totalorder %s129, %s130
      %p139 = scmp.eq.s32.totalorder %s21, 0
      %p140 = por %p138, %p139
      %p141 = scmp.ne.s32.totalorder %s129, %s130
      %p142 = scmp.eq.s32.totalorder %s22, 3
      %p143 = por %p141, %p142
      %p145 = scmp.ne.s32.totalorder %s130, %s144
      %p146 = scmp.eq.s32.totalorder %s22, 0
      %p147 = por %p145, %p146
      %p148 = scmp.le.s32.totalorder 1, %s16
      %p149 = scmp.lt.s32.totalorder %s16, 5
      %p150 = pnand %p148, %p149
      %p151 = pneg %p150
      // Predicated region
      $region9: #{tpu_custom_call.1} parent=5 // pred_check
        _
      $region10: #{tpu_custom_call.1} parent=5 // pred_check_branch
        %153 = sbr.rel (%p150) target = $region12
      $region11: #{tpu_custom_call.1} parent=5 // pred_region
        %s154 = ssub.s32 %s16, 1
        // Predicated region
        $region13: #{tpu_custom_call.1} parent=11 // pred_check
          %p155 = pneg %p77
        $region14: #{tpu_custom_call.1} parent=11 // pred_check_branch
          %157 = sbr.rel (%p155) target = $region16
        $region15: #{tpu_custom_call.1} parent=11 // pred_region
          _
        $region16: #{tpu_custom_call.1} parent=11 // pred_fallthru
          _
      $region12: #{tpu_custom_call.1} parent=5 // pred_fallthru
        _
      %p158 = scmp.lt.s32.totalorder %s16, 4
      // Predicated region
      $region17: #{tpu_custom_call.1} parent=5 // pred_check
        %p159 = pneg %p158
      $region18: #{tpu_custom_call.1} parent=5 // pred_check_branch
        %161 = sbr.rel (%p159) target = $region20
      $region19: #{tpu_custom_call.1} parent=5 // pred_region
        // Predicated region
        $region21: #{tpu_custom_call.1} parent=19 // pred_check
          %p162 = pneg %p50
        $region22: #{tpu_custom_call.1} parent=19 // pred_check_branch
          %164 = sbr.rel (%p162) target = $region24
        $region23: #{tpu_custom_call.1} parent=19 // pred_region
          %s165 = sand.u32 %s40, 1
          %s166 = scalar_lea.sflag [#allocation3], %s165
          %s167 = sand.u32 %s40, 1
          %s168 = smul.addr %s167, 4
          %s169 = scalar_lea.vmem [#allocation2], %s168
          %s171 = ssub.s32 64, 64
          %172 = vsyncadd %s166, %s171
          %s173 = smul.addr %s23, 2
          %s174 = sadd.s32 %s24, %s173
          %s175 = smul.addr %s174, 64
          %s176 = scalar_lea.hbm %s0, %s175
          %s178 = sshll.u32 %s169, 4
          %s179 = int_to_ptr.vmem [resolvable:$true] %s178
          %181 = dma.hbm_to_vmem [thread:$0]  %s176, 64, %s179, %s166
        $region24: #{tpu_custom_call.1} parent=19 // pred_fallthru
          _
      $region20: #{tpu_custom_call.1} parent=5 // pred_fallthru
        _
      %p182 = scmp.le.s32.totalorder 1, %s16
      %p183 = scmp.lt.s32.totalorder %s16, 5
      %p184 = pnand %p182, %p183
      %p185 = pneg %p184
      // Predicated region
      $region25: #{tpu_custom_call.1} parent=5 // pred_check
        _
      $region26: #{tpu_custom_call.1} parent=5 // pred_check_branch
        %187 = sbr.rel (%p184) target = $region28
      $region27: #{tpu_custom_call.1} parent=5 // pred_region
        %s188 = ssub.s32 %s16, 1
        %s189 = sand.u32 %s43, 1
        %s190 = scalar_lea.sflag [#allocation3], %s189
        %s191 = sand.u32 %s43, 1
        %s192 = smul.addr %s191, 4
        %s193 = scalar_lea.vmem [#allocation2], %s192
        // Predicated region
        $region29: #{tpu_custom_call.1} parent=27 // pred_check
          %p194 = pneg %p56
        $region30: #{tpu_custom_call.1} parent=27 // pred_check_branch
          %196 = sbr.rel (%p194) target = $region32
        $region31: #{tpu_custom_call.1} parent=27 // pred_region
          %197 = dma.done %s190, 64
        $region32: #{tpu_custom_call.1} parent=27 // pred_fallthru
          _
        %s198 = sand.u32 %s43, 1
        %s199 = scalar_lea.sflag [#allocation3], %s198
        %s200 = sand.u32 %s43, 1
        %s201 = smul.addr %s200, 4
        %s202 = scalar_lea.vmem [#allocation2], %s201
        %p203 = pneg %p56
        %p204 = pneg %p53
        %p205 = pneg %p77
        %p206 = pneg %p74
        %p207 = pneg %p98
        %p208 = pneg %p95
        %p209 = pneg %p119
        %p210 = pneg %p116
        %p211 = pneg %p140
        %p212 = pneg %p137
        %p213 = scmp.eq.s32.totalorder %s25, 0
        %p214 = scmp.eq.s32.totalorder %s26, 0
        %p215 = pnand %p213, %p214
        %p216 = pneg %p215
        %v217 = vld [vmem:[%s1] sm:$0xff]
        %v218 = vld [vmem:[%s193] sm:$0xf]
        %vm219 = vcmask 31744
        %v221 = vsel %vm219, %v217, 0
        %vm223 = vcmask 1043456
        %v225 = vsel %vm223, %v218, 0
        %227 = vmatprep.subr.mxu0 0.0
        %228 = vmatpush1.msra.mxu0 %v225
        %229 = vmatprep.subr.mxu0 0.0
        %230 = vmatpush1.msra.mxu0 0.0
        %231 = vmatprep.subr.mxu0 0.0
        %232 = vmatpush1.msra.mxu0 0.0
        %233 = vmatprep.subr.mxu0 0.0
        %234 = vmatpush1.msra.mxu0 0.0
        %235 = vmatprep.subr.mxu0 0.0
        %236 = vmatpush1.msra.mxu0 0.0
        %237 = vmatprep.subr.mxu0 0.0
        %238 = vmatpush1.msra.mxu0 0.0
        %239 = vmatprep.subr.mxu0 0.0
        %240 = vmatpush1.msra.mxu0 0.0
        %241 = vmatprep.subr.mxu0 0.0
        %242 = vmatpush1.msra.mxu0 0.0
        %243 = vmatprep.subr.mxu0 0.0
        %244 = vmatpush1.msra.mxu0 0.0
        %245 = vmatprep.subr.mxu0 0.0
        %246 = vmatpush1.msra.mxu0 0.0
        %247 = vmatprep.subr.mxu0 0.0
        %248 = vmatpush1.msra.mxu0 0.0
        %249 = vmatprep.subr.mxu0 0.0
        %250 = vmatpush1.msra.mxu0 0.0
        %251 = vmatprep.subr.mxu0 0.0
        %252 = vmatpush1.msra.mxu0 0.0
        %253 = vmatprep.subr.mxu0 0.0
        %254 = vmatpush1.msra.mxu0 0.0
        %255 = vmatprep.subr.mxu0 0.0
        %256 = vmatpush1.msra.mxu0 0.0
        %257 = vmatprep.subr.mxu0 0.0
        %258 = vmatpush1.msra.mxu0 0.0
        %259 = vmatprep.subr.mxu0 0.0
        %260 = vmatpush1.msra.mxu0 0.0
        %261 = vmatprep.subr.mxu0 0.0
        %262 = vmatpush1.msra.mxu0 0.0
        %263 = vmatprep.subr.mxu0 0.0
        %264 = vmatpush1.msra.mxu0 0.0
        %265 = vmatprep.subr.mxu0 0.0
        %266 = vmatpush1.msra.mxu0 0.0
        %267 = vmatprep.subr.mxu0 0.0
        %268 = vmatpush1.msra.mxu0 0.0
        %269 = vmatprep.subr.mxu0 0.0
        %270 = vmatpush1.msra.mxu0 0.0
        %271 = vmatprep.subr.mxu0 0.0
        %272 = vmatpush1.msra.mxu0 0.0
        %273 = vmatprep.subr.mxu0 0.0
        %274 = vmatpush1.msra.mxu0 0.0
        %275 = vmatprep.subr.mxu0 0.0
        %276 = vmatpush1.msra.mxu0 0.0
        %277 = vmatprep.subr.mxu0 0.0
        %278 = vmatpush1.msra.mxu0 0.0
        %279 = vmatprep.subr.mxu0 0.0
        %280 = vmatpush1.msra.mxu0 0.0
        %281 = vmatprep.subr.mxu0 0.0
        %282 = vmatpush1.msra.mxu0 0.0
        %283 = vmatprep.subr.mxu0 0.0
        %284 = vmatpush1.msra.mxu0 0.0
        %285 = vmatprep.subr.mxu0 0.0
        %286 = vmatpush1.msra.mxu0 0.0
        %287 = vmatprep.subr.mxu0 0.0
        %288 = vmatpush1.msra.mxu0 0.0
        %289 = vmatprep.subr.mxu0 0.0
        %290 = vmatpush1.msra.mxu0 0.0
        %291 = vmatprep.mubr.f32.mxu0 0.0
        %292 = vmatmul.mubr.f32.gmra.mrb[0].mxu0 %v221
        %v293 = vpop.f32.mrb[0].mxu0
        %v294 = vadd.f32 0.0, %v293
        %v295 = vpop.f32.mrb[0].mxu0
        %296 = vdwg.mxu0
        // Predicated region
        $region33: #{tpu_custom_call.1} parent=27 // pred_check
          _
        $region34: #{tpu_custom_call.1} parent=27 // pred_check_branch
          %298 = sbr.rel (%p215) target = $region36
        $region35: #{tpu_custom_call.1} parent=27 // pred_region
          %299 = vadd.xlane.f32.xlu0 %v294
          %v300 = vpop.xlane.xlu0 %299
          %v301 = vrcp.pop 128.0
          %v302 = vmul.f32 %v300, %v301
          %vm303 = vcmask 7168
          %304 = vst.msk [vmem:[%s4] sm:$0xff] %vm303, %v302
          %305 = vst [vmem:[#allocation5] sm:$0xff] 0.0
          %306 = vst [vmem:[#allocation6] sm:$0xff] 0.0
        $region36: #{tpu_custom_call.1} parent=27 // pred_fallthru
          _
        %v307 = vld [vmem:[%s4] sm:$0xff]
        %309 = vset.pattern.permute.xlu0 0
        %310 = vperm.xlu0 %309, %v307
        %v311 = vpop.permute.xlu0 %310
        %v313 = vsub.f32 %v294, %v311
        %v314 = vld [vmem:[#allocation5] sm:$0xff]
        %v315 = vld [vmem:[#allocation6] sm:$0xff]
        %v316 = vadd.f32 %v314, %v313
        %v317 = vmul.f32 %v313, %v313
        %v318 = vadd.f32 %v315, %v317
        %319 = vst [vmem:[#allocation5] sm:$0xff] %v316
        %320 = vst [vmem:[#allocation6] sm:$0xff] %v318
        // Predicated region
        $region37: #{tpu_custom_call.1} parent=27 // pred_check
          %p321 = pneg %p95
        $region38: #{tpu_custom_call.1} parent=27 // pred_check_branch
          %323 = sbr.rel (%p321) target = $region40
        $region39: #{tpu_custom_call.1} parent=27 // pred_region
          %s325 = ssub.s32 128, 128
          %326 = vsyncadd [#allocation4], %s325
          %s328 = sshll.u32 [#allocation5], 4
          %s329 = int_to_ptr.vmem [resolvable:$true] %s328
          %331 = dma.vmem_to_hbm [thread:$0]  %s329, 128, %s2, [#allocation4]
        $region40: #{tpu_custom_call.1} parent=27 // pred_fallthru
          _
        // Predicated region
        $region41: #{tpu_custom_call.1} parent=27 // pred_check
          %p332 = pneg %p116
        $region42: #{tpu_custom_call.1} parent=27 // pred_check_branch
          %334 = sbr.rel (%p332) target = $region44
        $region43: #{tpu_custom_call.1} parent=27 // pred_region
          %s336 = ssub.s32 128, 128
          %337 = vsyncadd [#allocation7], %s336
          %s339 = sshll.u32 [#allocation6], 4
          %s340 = int_to_ptr.vmem [resolvable:$true] %s339
          %342 = dma.vmem_to_hbm [thread:$0]  %s340, 128, %s3, [#allocation7]
        $region44: #{tpu_custom_call.1} parent=27 // pred_fallthru
          _
        // Predicated region
        $region45: #{tpu_custom_call.1} parent=27 // pred_check
          %p343 = pneg %p137
        $region46: #{tpu_custom_call.1} parent=27 // pred_check_branch
          %345 = sbr.rel (%p343) target = $region48
        $region47: #{tpu_custom_call.1} parent=27 // pred_region
          _
        $region48: #{tpu_custom_call.1} parent=27 // pred_fallthru
          _
        // Predicated region
        $region49: #{tpu_custom_call.1} parent=27 // pred_check
          %p346 = pneg %p95
        $region50: #{tpu_custom_call.1} parent=27 // pred_check_branch
          %348 = sbr.rel (%p346) target = $region52
        $region51: #{tpu_custom_call.1} parent=27 // pred_region
          %349 = dma.done [#allocation4], 128
        $region52: #{tpu_custom_call.1} parent=27 // pred_fallthru
          _
        // Predicated region
        $region53: #{tpu_custom_call.1} parent=27 // pred_check
          %p350 = pneg %p116
        $region54: #{tpu_custom_call.1} parent=27 // pred_check_branch
          %352 = sbr.rel (%p350) target = $region56
        $region55: #{tpu_custom_call.1} parent=27 // pred_region
          %353 = dma.done [#allocation7], 128
        $region56: #{tpu_custom_call.1} parent=27 // pred_fallthru
          _
        // Predicated region
        $region57: #{tpu_custom_call.1} parent=27 // pred_check
          %p354 = pneg %p137
        $region58: #{tpu_custom_call.1} parent=27 // pred_check_branch
          %356 = sbr.rel (%p354) target = $region60
        $region59: #{tpu_custom_call.1} parent=27 // pred_region
          _
        $region60: #{tpu_custom_call.1} parent=27 // pred_fallthru
          _
      $region28: #{tpu_custom_call.1} parent=5 // pred_fallthru
        _
      %p357 = scmp.le.s32.totalorder 2, %s16
      // Predicated region
      $region61: #{tpu_custom_call.1} parent=5 // pred_check
        %p358 = pneg %p357
      $region62: #{tpu_custom_call.1} parent=5 // pred_check_branch
        %360 = sbr.rel (%p358) target = $region64
      $region63: #{tpu_custom_call.1} parent=5 // pred_region
        %s361 = ssub.s32 %s16, 2
      $region64: #{tpu_custom_call.1} parent=5 // pred_fallthru
        _
    $region6: #{tpu_custom_call.1} parent=1 // loop_footer
      %s20 = sadd.s32 1, %s16
    $region7: #{tpu_custom_call.1} parent=1 // loop_footer_branch
      %15 = sbr.rel target = $region3
    $region8: #{tpu_custom_call.1} parent=1 // loop_exit
      _
    %362 = vsyncpa [#allocation3], 1
    %s363 = scalar_lea.sflag [#allocation3], 1
    %364 = vsyncpa %s363, 1
    %365 = vsyncpa [#allocation4], 1
    %s366 = scalar_lea.sflag [#allocation4], 1
    %367 = vsyncpa %s366, 1
    %368 = vsyncpa [#allocation7], 1

</llo_original>
